<compile_context>
chip_gen: v7x
topology: tpu7x:2x2x1
jax: 0.10.0
libtpu: 0.0.40
codegen_flags: <defaults>
</compile_context>

<pallas_src>
import functools

import jax
import jax.numpy as jnp
from jax import lax
from jax.experimental import pallas as pl
from jax.experimental.pallas import tpu as pltpu

_LANES = 128
_MAX_TILE_ROWS = 2048   # (2048,128) f32 tile = 1 MiB per input per buffer


def _bce_partial_kernel(p_ref, t_ref, out_ref, *,
                        steps, tile_rows, n_valid, need_mask):
    """Accumulates per-split partial sums of BCE-with-logits into out_ref."""
    c = pl.program_id(0)   # "parallel" split (v7x: one per TensorCore)
    i = pl.program_id(1)   # "arbitrary" reduction axis

    @pl.when(i == 0)
    def _init():
        out_ref[...] = jnp.zeros_like(out_ref)

    x = p_ref[...].astype(jnp.float32)
    t = t_ref[...].astype(jnp.float32)

    # Numerically stable BCE with logits; log1p matches the reference exactly
    # (log(1+y) underflows for |x| >~ 17) and costs the same single EUP log.
    loss = jnp.maximum(x, 0.0) - x * t + jnp.log1p(jnp.exp(-jnp.abs(x)))

    if need_mask:
        # Mask the ragged tail / over-coverage step using the *intended*
        # (unclamped) global element index vs the statically known count.
        block = c * steps + i
        row = lax.broadcasted_iota(jnp.int32, (tile_rows, _LANES), 0)
        lane = lax.broadcasted_iota(jnp.int32, (tile_rows, _LANES), 1)
        idx = (block * tile_rows + row) * _LANES + lane
        loss = jnp.where(idx < n_valid, loss, 0.0)

    # Fold the tile into the resident (8,128) output block on the VPU; the
    # single final cross-lane/sublane reduce happens in XLA on tiny partials.
    if tile_rows % 8 == 0:
        out_ref[...] += loss.reshape(tile_rows // 8, 8, _LANES).sum(axis=0)
    else:
        # Small single-block path with a ragged sublane count: one XLU reduce.
        out_ref[0:1, :] += jnp.sum(loss, axis=0, keepdims=True)


@jax.jit
def bce_loss(prediction, targets):
    """Pallas equivalent of BCELoss.forward (BCEWithLogitsLoss, mean)."""
    n = prediction.size  # true element count (static under jit)
    p = prediction.reshape(-1)
    t = targets.reshape(-1)

    rows = pl.cdiv(n, _LANES)
    pad = rows * _LANES - n
    if pad:
        # Rare ragged path (n % 128 != 0): pad the flat vectors by < 128
        # elements; the tail is masked out inside the kernel (need_mask=True).
        p = jnp.pad(p, (0, pad))
        t = jnp.pad(t, (0, pad))

    # Zero-copy reshape to a lane-dense (rows, 128) slab.
    p2d = p.reshape(rows, _LANES)
    t2d = t.reshape(rows, _LANES)

    if rows <= _MAX_TILE_ROWS:
        tile_rows = rows                 # single block == the whole slab
    else:
        tile_rows = _MAX_TILE_ROWS

    total_blocks = pl.cdiv(rows, tile_rows)
    num_splits = 2 if total_blocks >= 2 else 1   # v7x: one split per TC
    steps = pl.cdiv(total_blocks, num_splits)
    last_block = total_blocks - 1
    need_mask = (num_splits * steps * tile_rows * _LANES) != n

    def in_map(c, i):
        # Clamp so a possible over-coverage step re-reads the last block; its
        # contribution is masked to zero inside the kernel.
        return (jnp.minimum(c * steps + i, last_block), 0)

    kernel = functools.partial(
        _bce_partial_kernel,
        steps=steps, tile_rows=tile_rows, n_valid=n, need_mask=need_mask)

    partials = pl.pallas_call(
        kernel,
        out_shape=jax.ShapeDtypeStruct((num_splits * 8, _LANES), jnp.float32),
        grid_spec=pltpu.PrefetchScalarGridSpec(
            num_scalar_prefetch=0,
            grid=(num_splits, steps),
            in_specs=[
                pl.BlockSpec((tile_rows, _LANES), in_map),
                pl.BlockSpec((tile_rows, _LANES), in_map),
            ],
            out_specs=pl.BlockSpec((8, _LANES), lambda c, i: (c, 0)),
        ),
        compiler_params=pltpu.CompilerParams(
            dimension_semantics=("parallel", "arbitrary")),
    )(p2d, t2d)

    # Final add + divide in XLA (tiny).
    return jnp.sum(partials) / jnp.float32(n)


def _reference(prediction, targets):
    x = prediction.reshape(-1).astype(jnp.float32)
    t = targets.reshape(-1).astype(jnp.float32)
    loss = jnp.maximum(x, 0.0) - x * t + jnp.log1p(jnp.exp(-jnp.abs(x)))
    return jnp.mean(loss)


if __name__ == "__main__":
    key = jax.random.PRNGKey(0)
    k1, k2 = jax.random.split(key, 2)

    # NCHW logits + binary targets, consistent with the PyTorch module usage.
    prediction = jax.random.normal(k1, (2, 4, 16, 16), jnp.float32)
    targets = (jax.random.uniform(k2, (2, 4, 16, 16)) > 0.5).astype(jnp.float32)

    out = bce_loss(prediction, targets)
    out = jax.block_until_ready(out)

    ref = _reference(prediction, targets)
    assert jnp.allclose(out, ref, rtol=1e-5, atol=1e-5), (out, ref)

    print("KERNEL_OK")
</pallas_src>

<mosaic_0001>
module attributes {stable_mosaic.version = 11 : i64} {
  func.func @_bce_partial_kernel(%arg0: i32, %arg1: i32, %arg2: memref<16x128xf32, #tpu.memory_space<vmem>>, %arg3: memref<16x128xf32, #tpu.memory_space<vmem>>, %arg4: memref<8x128xf32, #tpu.memory_space<vmem>>) attributes {dimension_semantics = [#tpu.dimension_semantics<parallel>, #tpu.dimension_semantics<arbitrary>], iteration_bounds = array<i64: 1, 1>, scalar_prefetch = 0 : i64, scratch_operands = 0 : i64, tpu.core_type = #tpu.core_type<tc>, window_params = [{transform_indices = @transform_0, window_bounds = array<i64: 16, 128>}, {transform_indices = @transform_1, window_bounds = array<i64: 16, 128>}, {transform_indices = @transform_2, window_bounds = array<i64: 8, 128>}]} {
    %c0_i32 = arith.constant 0 : i32
    %0 = arith.cmpi eq, %arg1, %c0_i32 : i32
    %1 = arith.extui %0 : i1 to i32
    %c0_i32_0 = arith.constant 0 : i32
    %2 = arith.cmpi ne, %1, %c0_i32_0 : i32
    scf.if %2 {
      %cst_10 = arith.constant 0.000000e+00 : f32
      %20 = vector.broadcast %cst_10 : f32 to vector<8x128xf32>
      %c0_11 = arith.constant 0 : index
      %c0_12 = arith.constant 0 : index
      %21 = vector.load %arg4[%c0_11, %c0_12] : memref<8x128xf32, #tpu.memory_space<vmem>>, vector<8x128xf32>
      tpu.vector_store %arg4[%c0_11, %c0_12], %20 {strides = array<i32>} : memref<8x128xf32, #tpu.memory_space<vmem>>, vector<8x128xf32>,
    } else {
    }
    %c0 = arith.constant 0 : index
    %c0_1 = arith.constant 0 : index
    %3 = vector.load %arg2[%c0, %c0_1] : memref<16x128xf32, #tpu.memory_space<vmem>>, vector<16x128xf32>
    %c0_2 = arith.constant 0 : index
    %c0_3 = arith.constant 0 : index
    %4 = vector.load %arg3[%c0_2, %c0_3] : memref<16x128xf32, #tpu.memory_space<vmem>>, vector<16x128xf32>
    %cst = arith.constant 0.000000e+00 : f32
    %5 = vector.broadcast %cst : f32 to vector<16x128xf32>
    %6 = arith.maximumf %3, %5 : vector<16x128xf32>
    %7 = arith.mulf %3, %4 : vector<16x128xf32>
    %8 = arith.subf %6, %7 : vector<16x128xf32>
    %9 = math.absf %3 : vector<16x128xf32>
    %cst_4 = arith.constant 0.000000e+00 : f32
    %10 = vector.broadcast %cst_4 : f32 to vector<16x128xf32>
    %11 = arith.subf %10, %9 : vector<16x128xf32>
    %12 = math.exp %11 : vector<16x128xf32>
    %13 = math.log1p %12 : vector<16x128xf32>
    %14 = arith.addf %8, %13 : vector<16x128xf32>
    %c0_5 = arith.constant 0 : index
    %c0_6 = arith.constant 0 : index
    %15 = vector.load %arg4[%c0_5, %c0_6] : memref<8x128xf32, #tpu.memory_space<vmem>>, vector<8x128xf32>
    %16 = vector.shape_cast %14 : vector<16x128xf32> to vector<2x8x128xf32>
    %cst_7 = arith.constant dense<0.000000e+00> : vector<8x128xf32>
    %17 = vector.multi_reduction <add>, %16, %cst_7 [0] : vector<2x8x128xf32> to vector<8x128xf32>
    %18 = arith.addf %15, %17 : vector<8x128xf32>
    %c0_8 = arith.constant 0 : index
    %c0_9 = arith.constant 0 : index
    %19 = vector.load %arg4[%c0_8, %c0_9] : memref<8x128xf32, #tpu.memory_space<vmem>>, vector<8x128xf32>
    tpu.vector_store %arg4[%c0_8, %c0_9], %18 {strides = array<i32>} : memref<8x128xf32, #tpu.memory_space<vmem>>, vector<8x128xf32>,
    return
  }
  func.func @transform_0(%arg0: i32, %arg1: i32) -> (i32, i32) {
    %c1_i32 = arith.constant 1 : i32
    %0 = arith.muli %arg0, %c1_i32 : i32
    %1 = arith.addi %0, %arg1 : i32
    %c0_i32 = arith.constant 0 : i32
    %2 = arith.minsi %1, %c0_i32 : i32
    %c0_i32_0 = arith.constant 0 : i32
    %c0_i32_1 = arith.constant 0 : i32
    return %2, %c0_i32_0 : i32, i32
  }
  func.func @transform_1(%arg0: i32, %arg1: i32) -> (i32, i32) {
    %c1_i32 = arith.constant 1 : i32
    %0 = arith.muli %arg0, %c1_i32 : i32
    %1 = arith.addi %0, %arg1 : i32
    %c0_i32 = arith.constant 0 : i32
    %2 = arith.minsi %1, %c0_i32 : i32
    %c0_i32_0 = arith.constant 0 : i32
    %c0_i32_1 = arith.constant 0 : i32
    return %2, %c0_i32_0 : i32, i32
  }
  func.func @transform_2(%arg0: i32, %arg1: i32) -> (i32, i32) {
    %c0_i32 = arith.constant 0 : i32
    %c0_i32_0 = arith.constant 0 : i32
    return %arg0, %c0_i32 : i32, i32
  }
}

</mosaic_0001>

<llo_original>
// kernel: bce_loss.1
$region0: #{bce_loss.1}
  #allocation0 [shape = 'u32[]', space=smem, size = 0x4, offset = 0x4, fixed_abs, tag = 'smem constant byte address 0x4 - core index']
  #allocation1 [shape = 'u32[144,128]{1,0:T(1,128)}', space=vmem, size = 0x12000, scoped, tag = 'internal scratch']
  %s0 = inlined_call_operand.vmem [shape: f32[16,128], index: 0, kind: input, shape index: {}]
  %s1 = inlined_call_operand.vmem [shape: f32[16,128], index: 1, kind: input, shape index: {}]
  %s2 = inlined_call_operand.vmem [shape: f32[8,128], index: 2, kind: output, shape index: {}]
  %s3 = sld [smem:[#allocation0]]
  $region22: #{bce_loss.1} parent=0
    _
  %s5 = ssub.s32 1, %s3
  %s6 = scalar_select 0, %s5, %s3
  // Predicated region
  $region2: #{bce_loss.1} parent=0 // pred_check
    _
  $region3: #{bce_loss.1} parent=0 // pred_check_branch
    %8 = sbr.rel (0) target = $region5
  $region4: #{bce_loss.1} parent=0 // pred_region
    %s9 = sadd.s32 0, 0
    %p10 = scmp.lt.s32.totalorder %s9, 0
    %s11 = scalar_select %p10, %s9, 0
    %s12 = smul.u32 2, %s11
    %p13 = scmp.lt.s32.totalorder %s12, 1
    %s14 = scalar_select %p13, %s12, 1
    %s15 = smul.addr %s14, 8
    %s16 = scalar_lea.vmem %s0, %s15
    %s17 = sadd.s32 0, 0
    %p18 = scmp.lt.s32.totalorder %s17, 0
    %s19 = scalar_select %p18, %s17, 0
    %s20 = smul.u32 2, %s19
  $region5: #{bce_loss.1} parent=0 // pred_fallthru
    _
  // Predicated region
  $region6: #{bce_loss.1} parent=0 // pred_check
    _
  $region7: #{bce_loss.1} parent=0 // pred_check_branch
    %22 = sbr.rel (0) target = $region9
  $region8: #{bce_loss.1} parent=0 // pred_region
    %s23 = sadd.s32 0, 0
    %p24 = scmp.lt.s32.totalorder %s23, 0
    %s25 = scalar_select %p24, %s23, 0
    %s26 = smul.u32 2, %s25
    %p27 = scmp.lt.s32.totalorder %s26, 1
    %s28 = scalar_select %p27, %s26, 1
    %s29 = smul.addr %s28, 8
    %s30 = scalar_lea.vmem %s1, %s29
    %s31 = sadd.s32 0, 0
    %p32 = scmp.lt.s32.totalorder %s31, 0
    %s33 = scalar_select %p32, %s31, 0
    %s34 = smul.u32 2, %s33
  $region9: #{bce_loss.1} parent=0 // pred_fallthru
    _
  %s35 = sadd.s32 0, 0
  %p36 = scmp.lt.s32.totalorder %s35, 0
  %s37 = scalar_select %p36, %s35, 0
  %s38 = smul.u32 2, %s37
  %p39 = scmp.lt.s32.totalorder %s38, 1
  %s40 = scalar_select %p39, %s38, 1
  %s41 = smul.addr %s40, 8
  %s42 = scalar_lea.vmem %s0, %s41
  %s43 = sadd.s32 0, 0
  %p44 = scmp.lt.s32.totalorder %s43, 0
  %s45 = scalar_select %p44, %s43, 0
  %s46 = smul.u32 2, %s45
  %p47 = scmp.lt.s32.totalorder %s46, 1
  %s48 = scalar_select %p47, %s46, 1
  %s49 = smul.addr %s48, 8
  %s50 = scalar_lea.vmem %s1, %s49
  %s51 = sadd.s32 0, 0
  %p52 = scmp.lt.s32.totalorder %s51, 0
  %s53 = scalar_select %p52, %s51, 0
  %s54 = smul.u32 2, %s53
  %p55 = scmp.lt.s32.totalorder %s54, 1
  %s56 = scalar_select %p55, %s54, 1
  %s57 = smul.addr %s56, 8
  %s58 = scalar_lea.vmem %s0, %s57
  %s59 = sadd.s32 0, 0
  %p60 = scmp.lt.s32.totalorder %s59, 0
  %s61 = scalar_select %p60, %s59, 0
  %s62 = smul.u32 2, %s61
  %s63 = sadd.s32 0, 0
  %p64 = scmp.lt.s32.totalorder %s63, 0
  %s65 = scalar_select %p64, %s63, 0
  %s66 = smul.u32 2, %s65
  %p67 = scmp.lt.s32.totalorder %s66, 1
  %s68 = scalar_select %p67, %s66, 1
  %s69 = smul.addr %s68, 8
  %s70 = scalar_lea.vmem %s1, %s69
  %s71 = sadd.s32 0, 0
  %p72 = scmp.lt.s32.totalorder %s71, 0
  %s73 = scalar_select %p72, %s71, 0
  %s74 = smul.u32 2, %s73
  %p75 = scmp.eq.s32.totalorder 0, 0
  // Predicated region
  $region10: #{bce_loss.1} parent=0 // pred_check
    %p76 = pneg %p75
  $region11: #{bce_loss.1} parent=0 // pred_check_branch
    %78 = sbr.rel (%p76) target = $region13
  $region12: #{bce_loss.1} parent=0 // pred_region
    %79 = vst [vmem:[%s2] sm:$0xff] 0.0
  $region13: #{bce_loss.1} parent=0 // pred_fallthru
    _
  %v80 = vld [vmem:[%s58] sm:$0xff]
  %v81 = vld [vmem:[%s58 + $0x8] sm:$0xff]
  %v82 = vld [vmem:[%s70] sm:$0xff]
  %v83 = vld [vmem:[%s70 + $0x8] sm:$0xff]
  %v84 = vmax.f32 %v80, 0.0
  %v85 = vmax.f32 %v81, 0.0
  %v86 = vmul.f32 %v80, %v82
  %v87 = vmul.f32 %v81, %v83
  %v88 = vsub.f32 %v84, %v86
  %v89 = vsub.f32 %v85, %v87
  %v90 = vand.u32 2147483647, %v80
  %v91 = vand.u32 2147483647, %v81
  %v92 = vsub.f32 0.0, %v90
  %v93 = vsub.f32 0.0, %v91
  %v94 = vmul.f32 %v92, 1.442695
  %v95 = vpow.pop %v94
  %v96 = vmul.f32 %v93, 1.442695
  %v97 = vpow.pop %v96
  %v98 = vadd.f32 %v95, 1.0
  %v99 = vlog2.pop %v98
  %v100 = vmul.f32 %v99, 0.6931472
  %v101 = vmul.f32 -0.5, %v95
  %v102 = vadd.f32 %v101, 1.0
  %v103 = vmul.f32 %v102, %v95
  %v104 = vand.u32 2147483647, %v95
  %vm105 = vcmp.lt.f32.partialorder %v104, 0.0004427343
  %v106 = vsel %vm105, %v103, %v100
  %v107 = vadd.f32 %v97, 1.0
  %v108 = vlog2.pop %v107
  %v109 = vmul.f32 %v108, 0.6931472
  %v110 = vmul.f32 -0.5, %v97
  %v111 = vadd.f32 %v110, 1.0
  %v112 = vmul.f32 %v111, %v97
  %v113 = vand.u32 2147483647, %v97
  %vm114 = vcmp.lt.f32.partialorder %v113, 0.0004427343
  %v115 = vsel %vm114, %v112, %v109
  %v116 = vadd.f32 %v88, %v106
  %v117 = vadd.f32 %v89, %v115
  %v118 = vld [vmem:[%s2] sm:$0xff]
  %v119 = vadd.f32 %v116, %v117
  %v120 = vadd.f32 %v118, %v119
  %121 = vst [vmem:[%s2] sm:$0xff] %v120
  // Predicated region
  $region14: #{bce_loss.1} parent=0 // pred_check
    _
  $region15: #{bce_loss.1} parent=0 // pred_check_branch
    %123 = sbr.rel (0) target = $region17
  $region16: #{bce_loss.1} parent=0 // pred_region
    _
  $region17: #{bce_loss.1} parent=0 // pred_fallthru
    _
  // Predicated region
  $region18: #{bce_loss.1} parent=0 // pred_check
    _
  $region19: #{bce_loss.1} parent=0 // pred_check_branch
    %125 = sbr.rel (0) target = $region21
  $region20: #{bce_loss.1} parent=0 // pred_region
    _
  $region21: #{bce_loss.1} parent=0 // pred_fallthru
    _

</llo_original>
